<compile_context>
chip_gen: v7x
topology: tpu7x:2x2x1
jax: 0.10.0
libtpu: 0.0.40
codegen_flags: <defaults>
</compile_context>

<pallas_src>
import functools

import jax
import jax.numpy as jnp
from jax.experimental import pallas as pl
from jax.experimental.pallas import tpu as pltpu

_LANE = 128
_SUBLANE = 8


def _round_up(v, m):
    return ((v + m - 1) // m) * m


def _cdiv(a, b):
    return (a + b - 1) // b


def _mlp_kernel(x_ref, w1_ref, b1_ref, w2_ref, b2_ref, w3_ref, b3_ref, o_ref):
    # x: (tb, n0); weights resident in VMEM.  All accumulation in f32 on the MXU;
    # bias add + relu stay f32 on the VPU (safe on v5e which has no bf16 VALU).
    x = x_ref[...]
    h1 = jnp.maximum(
        jnp.dot(x, w1_ref[...], preferred_element_type=jnp.float32) + b1_ref[...],
        0.0,
    )
    h2 = jnp.maximum(
        jnp.dot(h1.astype(w2_ref.dtype), w2_ref[...],
                preferred_element_type=jnp.float32) + b2_ref[...],
        0.0,
    )
    pred = (jnp.dot(h2.astype(w3_ref.dtype), w3_ref[...],
                    preferred_element_type=jnp.float32) + b3_ref[...])
    o_ref[...] = pred.astype(o_ref.dtype)


def prepare_params(parameters, net, compute_dtype=jnp.float32):
    """Slice the flat parameter vector exactly like the PyTorch module and
    zero-pad ONLY the hidden (VMEM-internal) dims n1, n2 up to 128 lanes.

    Zero padding is exact: padded weight columns + zero bias give relu(0)=0
    hidden units, which then hit zero weight rows in the next layer.
    n0 / n3 (the HBM-streamed dims) are left unpadded.  Call once per parameter
    set and reuse the returned tuple across forward calls.
    """
    n0, n1, n2, n3 = net
    expected = n0 * n1 + n1 + n1 * n2 + n2 + n2 * n3 + n3
    if parameters.shape[0] != expected:
        raise ValueError(f"parameters has length {parameters.shape[0]}, "
                         f"expected {expected} for net={net}")
    n1p = _round_up(n1, _LANE)
    n2p = _round_up(n2, _LANE)

    off = 0
    w1 = parameters[off:off + n0 * n1].reshape(n0, n1); off += n0 * n1
    b1 = parameters[off:off + n1];                      off += n1
    w2 = parameters[off:off + n1 * n2].reshape(n1, n2); off += n1 * n2
    b2 = parameters[off:off + n2];                      off += n2
    w3 = parameters[off:off + n2 * n3].reshape(n2, n3); off += n2 * n3
    b3 = parameters[off:off + n3];                      off += n3

    pad2 = lambda a, r, c: jnp.pad(a, ((0, r - a.shape[0]), (0, c - a.shape[1])))
    padb = lambda a, c: jnp.pad(a, (0, c - a.shape[0])).reshape(1, c)

    # Weights go to the MXU -> compute_dtype; biases stay f32 (added post-accum).
    return (pad2(w1, n0, n1p).astype(compute_dtype),  padb(b1, n1p).astype(jnp.float32),
            pad2(w2, n1p, n2p).astype(compute_dtype), padb(b2, n2p).astype(jnp.float32),
            pad2(w3, n2p, n3).astype(compute_dtype),  padb(b3, n3).astype(jnp.float32))


@functools.partial(jax.jit, static_argnames=("net", "tb_target"))
def vae_reconstruction_forward_prepared(x, prepared, *, net, tb_target=1024):
    """Forward pass given pre-padded parameters from prepare_params()."""
    n0, n1, n2, n3 = net
    w1, b1, w2, b2, w3, b3 = prepared
    n1p, n2p = w1.shape[1], w2.shape[1]
    B = x.shape[0]

    # Even number of grid steps (>= 2) so both v7x TensorCores get work; batch
    # tile ~tb_target rows to amortize the per-step pipeline overhead.
    steps = max(2, 2 * _cdiv(B, 2 * tb_target))
    tb = max(_SUBLANE, _round_up(_cdiv(B, steps), _SUBLANE))
    Bp = steps * tb

    x = x.astype(w1.dtype)
    if Bp != B:
        x = jnp.pad(x, ((0, Bp - B), (0, 0)))   # rows only; feature dim unpadded

    resident = lambda shape: pl.BlockSpec(shape, lambda i: (0, 0))
    itemsize = jnp.dtype(w1.dtype).itemsize
    cost = pl.CostEstimate(
        flops=2 * Bp * (n0 * n1p + n1p * n2p + n2p * n3),
        transcendentals=0,
        bytes_accessed=(Bp * n0 * itemsize + Bp * n3 * 4
                        + (w1.size + w2.size + w3.size) * itemsize
                        + (b1.size + b2.size + b3.size) * 4),
    )

    out = pl.pallas_call(
        _mlp_kernel,
        out_shape=jax.ShapeDtypeStruct((Bp, n3), jnp.float32),
        grid=(steps,),
        in_specs=[
            pl.BlockSpec((tb, n0), lambda i: (i, 0)),   # x: blocked over batch
            resident((n0, n1p)),                        # w1 (resident in VMEM)
            resident((1, n1p)),                         # b1
            resident((n1p, n2p)),                       # w2
            resident((1, n2p)),                         # b2
            resident((n2p, n3)),                        # w3
            resident((1, n3)),                          # b3
        ],
        out_specs=pl.BlockSpec((tb, n3), lambda i: (i, 0)),
        compiler_params=pltpu.CompilerParams(
            dimension_semantics=("parallel",),
        ),
        cost_estimate=cost,
    )(x, w1, b1, w2, b2, w3, b3)

    return out[:B] if Bp != B else out


def vae_reconstruction_forward(x, parameters, net, tb_target=1024,
                               compute_dtype=jnp.float32):
    """Convenience wrapper mirroring VAE_reconstruction.forward(x, parameters).

    Prefer preparing parameters once via prepare_params() and calling
    vae_reconstruction_forward_prepared() when `parameters` is reused.
    """
    prepared = prepare_params(parameters, net, compute_dtype)
    return vae_reconstruction_forward_prepared(x, prepared, net=net,
                                               tb_target=tb_target)


def _reference_forward(x, parameters, net):
    n0, n1, n2, n3 = net
    off = 0
    w1 = parameters[off:off + n0 * n1].reshape(n0, n1); off += n0 * n1
    b1 = parameters[off:off + n1];                      off += n1
    w2 = parameters[off:off + n1 * n2].reshape(n1, n2); off += n1 * n2
    b2 = parameters[off:off + n2];                      off += n2
    w3 = parameters[off:off + n2 * n3].reshape(n2, n3); off += n2 * n3
    b3 = parameters[off:off + n3];                      off += n3
    l1 = jax.nn.relu(x @ w1 + b1)
    l2 = jax.nn.relu(l1 @ w2 + b2)
    return l2 @ w3 + b3


if __name__ == "__main__":
    # Small synthetic sizes consistent with the module's 3-layer MLP structure.
    net = (32, 64, 64, 16)   # n0 -> n1 -> n2 -> n3
    B = 8
    n_params = (net[0] * net[1] + net[1]
                + net[1] * net[2] + net[2]
                + net[2] * net[3] + net[3])

    key = jax.random.PRNGKey(0)
    kx, kp = jax.random.split(key)
    x = jax.random.normal(kx, (B, net[0]), dtype=jnp.float32)
    # Deterministic synthetic flat parameter vector (the module defines no weights
    # in __init__; they arrive as a flat vector at call time).
    parameters = 0.05 * jax.random.normal(kp, (n_params,), dtype=jnp.float32)

    ref = _reference_forward(x, parameters, net)

    # f32 path (default, semantics-preserving).
    prepared_f32 = prepare_params(parameters, net, jnp.float32)
    out = vae_reconstruction_forward_prepared(x, prepared_f32, net=net)
    out = jax.block_until_ready(out)
    assert out.shape == (B, net[3])
    assert jnp.allclose(out, ref, atol=1e-4, rtol=1e-4), "f32 mismatch vs reference"

    # bf16-input path (HBM-traffic / MXU-native optimization for v6e/v7x), f32 accum.
    prepared_bf16 = prepare_params(parameters, net, jnp.bfloat16)
    out_bf16 = jax.block_until_ready(
        vae_reconstruction_forward_prepared(x, prepared_bf16, net=net))
    assert out_bf16.shape == (B, net[3])
    assert jnp.allclose(out_bf16, ref, atol=3e-2, rtol=3e-2), "bf16 mismatch vs reference"

    # TODO(synk): .cost() (cross-entropy) is not part of forward(); not implemented.
    print("KERNEL_OK")
</pallas_src>

<mosaic_0001>
module attributes {stable_mosaic.version = 11 : i64} {
  func.func @_mlp_kernel(%arg0: i32, %arg1: memref<8x32xf32, #tpu.memory_space<vmem>>, %arg2: memref<32x128xf32, #tpu.memory_space<vmem>>, %arg3: memref<1x128xf32, #tpu.memory_space<vmem>>, %arg4: memref<128x128xf32, #tpu.memory_space<vmem>>, %arg5: memref<1x128xf32, #tpu.memory_space<vmem>>, %arg6: memref<128x16xf32, #tpu.memory_space<vmem>>, %arg7: memref<1x16xf32, #tpu.memory_space<vmem>>, %arg8: memref<8x16xf32, #tpu.memory_space<vmem>>) attributes {dimension_semantics = [#tpu.dimension_semantics<parallel>], iteration_bounds = array<i64: 2>, scalar_prefetch = 0 : i64, scratch_operands = 0 : i64, tpu.core_type = #tpu.core_type<tc>, window_params = [{transform_indices = @transform_0, window_bounds = array<i64: 8, 32>}, {pipeline_mode = #tpu.pipeline_mode<synchronous>, transform_indices = @transform_1, window_bounds = array<i64: 32, 128>}, {pipeline_mode = #tpu.pipeline_mode<synchronous>, transform_indices = @transform_2, window_bounds = array<i64: 1, 128>}, {pipeline_mode = #tpu.pipeline_mode<synchronous>, transform_indices = @transform_3, window_bounds = array<i64: 128, 128>}, {pipeline_mode = #tpu.pipeline_mode<synchronous>, transform_indices = @transform_4, window_bounds = array<i64: 1, 128>}, {pipeline_mode = #tpu.pipeline_mode<synchronous>, transform_indices = @transform_5, window_bounds = array<i64: 128, 16>}, {pipeline_mode = #tpu.pipeline_mode<synchronous>, transform_indices = @transform_6, window_bounds = array<i64: 1, 16>}, {transform_indices = @transform_7, window_bounds = array<i64: 8, 16>}]} {
    %c0 = arith.constant 0 : index
    %c0_0 = arith.constant 0 : index
    %0 = vector.load %arg1[%c0, %c0_0] : memref<8x32xf32, #tpu.memory_space<vmem>>, vector<8x32xf32>
    %c0_1 = arith.constant 0 : index
    %c0_2 = arith.constant 0 : index
    %1 = vector.load %arg2[%c0_1, %c0_2] : memref<32x128xf32, #tpu.memory_space<vmem>>, vector<32x128xf32>
    %cst = arith.constant dense<0.000000e+00> : vector<8x128xf32>
    %2 = tpu.matmul %0, %1, %cst {dimension_numbers = #tpu.dot_dimension_numbers<[1], [0], [0], [1], [0, 0, 1, 1], [], []>} : vector<8x32xf32>, vector<32x128xf32>, vector<8x128xf32> -> vector<8x128xf32>
    %c0_3 = arith.constant 0 : index
    %c0_4 = arith.constant 0 : index
    %3 = vector.load %arg3[%c0_3, %c0_4] : memref<1x128xf32, #tpu.memory_space<vmem>>, vector<1x128xf32>
    %4 = vector.broadcast %3 : vector<1x128xf32> to vector<8x128xf32>
    %5 = arith.addf %2, %4 : vector<8x128xf32>
    %cst_5 = arith.constant 0.000000e+00 : f32
    %6 = vector.broadcast %cst_5 : f32 to vector<8x128xf32>
    %7 = arith.maximumf %5, %6 : vector<8x128xf32>
    %c0_6 = arith.constant 0 : index
    %c0_7 = arith.constant 0 : index
    %8 = vector.load %arg4[%c0_6, %c0_7] : memref<128x128xf32, #tpu.memory_space<vmem>>, vector<128x128xf32>
    %cst_8 = arith.constant dense<0.000000e+00> : vector<8x128xf32>
    %9 = tpu.matmul %7, %8, %cst_8 {dimension_numbers = #tpu.dot_dimension_numbers<[1], [0], [0], [1], [0, 0, 1, 1], [], []>} : vector<8x128xf32>, vector<128x128xf32>, vector<8x128xf32> -> vector<8x128xf32>
    %c0_9 = arith.constant 0 : index
    %c0_10 = arith.constant 0 : index
    %10 = vector.load %arg5[%c0_9, %c0_10] : memref<1x128xf32, #tpu.memory_space<vmem>>, vector<1x128xf32>
    %11 = vector.broadcast %10 : vector<1x128xf32> to vector<8x128xf32>
    %12 = arith.addf %9, %11 : vector<8x128xf32>
    %cst_11 = arith.constant 0.000000e+00 : f32
    %13 = vector.broadcast %cst_11 : f32 to vector<8x128xf32>
    %14 = arith.maximumf %12, %13 : vector<8x128xf32>
    %c0_12 = arith.constant 0 : index
    %c0_13 = arith.constant 0 : index
    %15 = vector.load %arg6[%c0_12, %c0_13] : memref<128x16xf32, #tpu.memory_space<vmem>>, vector<128x16xf32>
    %cst_14 = arith.constant dense<0.000000e+00> : vector<8x16xf32>
    %16 = tpu.matmul %14, %15, %cst_14 {dimension_numbers = #tpu.dot_dimension_numbers<[1], [0], [0], [1], [0, 0, 1, 1], [], []>} : vector<8x128xf32>, vector<128x16xf32>, vector<8x16xf32> -> vector<8x16xf32>
    %c0_15 = arith.constant 0 : index
    %c0_16 = arith.constant 0 : index
    %17 = vector.load %arg7[%c0_15, %c0_16] : memref<1x16xf32, #tpu.memory_space<vmem>>, vector<1x16xf32>
    %18 = vector.broadcast %17 : vector<1x16xf32> to vector<8x16xf32>
    %19 = arith.addf %16, %18 : vector<8x16xf32>
    %c0_17 = arith.constant 0 : index
    %c0_18 = arith.constant 0 : index
    %20 = vector.load %arg8[%c0_17, %c0_18] : memref<8x16xf32, #tpu.memory_space<vmem>>, vector<8x16xf32>
    tpu.vector_store %arg8[%c0_17, %c0_18], %19 {strides = array<i32>} : memref<8x16xf32, #tpu.memory_space<vmem>>, vector<8x16xf32>,
    return
  }
  func.func @transform_0(%arg0: i32) -> (i32, i32) {
    %c0_i32 = arith.constant 0 : i32
    %c0_i32_0 = arith.constant 0 : i32
    return %arg0, %c0_i32 : i32, i32
  }
  func.func @transform_1(%arg0: i32) -> (i32, i32) {
    %c0_i32 = arith.constant 0 : i32
    %c0_i32_0 = arith.constant 0 : i32
    %c0_i32_1 = arith.constant 0 : i32
    return %c0_i32, %c0_i32_0 : i32, i32
  }
  func.func @transform_2(%arg0: i32) -> (i32, i32) {
    %c0_i32 = arith.constant 0 : i32
    %c0_i32_0 = arith.constant 0 : i32
    %c0_i32_1 = arith.constant 0 : i32
    return %c0_i32, %c0_i32_0 : i32, i32
  }
  func.func @transform_3(%arg0: i32) -> (i32, i32) {
    %c0_i32 = arith.constant 0 : i32
    %c0_i32_0 = arith.constant 0 : i32
    %c0_i32_1 = arith.constant 0 : i32
    return %c0_i32, %c0_i32_0 : i32, i32
  }
  func.func @transform_4(%arg0: i32) -> (i32, i32) {
    %c0_i32 = arith.constant 0 : i32
    %c0_i32_0 = arith.constant 0 : i32
    %c0_i32_1 = arith.constant 0 : i32
    return %c0_i32, %c0_i32_0 : i32, i32
  }
  func.func @transform_5(%arg0: i32) -> (i32, i32) {
    %c0_i32 = arith.constant 0 : i32
    %c0_i32_0 = arith.constant 0 : i32
    %c0_i32_1 = arith.constant 0 : i32
    return %c0_i32, %c0_i32_0 : i32, i32
  }
  func.func @transform_6(%arg0: i32) -> (i32, i32) {
    %c0_i32 = arith.constant 0 : i32
    %c0_i32_0 = arith.constant 0 : i32
    %c0_i32_1 = arith.constant 0 : i32
    return %c0_i32, %c0_i32_0 : i32, i32
  }
  func.func @transform_7(%arg0: i32) -> (i32, i32) {
    %c0_i32 = arith.constant 0 : i32
    %c0_i32_0 = arith.constant 0 : i32
    return %arg0, %c0_i32 : i32, i32
  }
}

</mosaic_0001>

<llo_original>
// kernel: vae_reconstruction_forward_prepared.1
$region0: #{vae_reconstruction_forward_prepared.1}
  #allocation0 [shape = 'u32[]', space=smem, size = 0x4, offset = 0x4, fixed_abs, tag = 'smem constant byte address 0x4 - core index']
  #allocation1 [shape = 'u32[144,128]{1,0:T(1,128)}', space=vmem, size = 0x12000, scoped, tag = 'internal scratch']
  %s0 = inlined_call_operand.vmem [shape: f32[16,32], index: 0, kind: input, shape index: {}]
  %s1 = inlined_call_operand.vmem [shape: f32[32,128], index: 1, kind: input, shape index: {}]
  %s2 = inlined_call_operand.vmem [shape: f32[1,128], index: 2, kind: input, shape index: {}]
  %s3 = inlined_call_operand.vmem [shape: f32[128,128], index: 3, kind: input, shape index: {}]
  %s4 = inlined_call_operand.vmem [shape: f32[1,128], index: 4, kind: input, shape index: {}]
  %s5 = inlined_call_operand.vmem [shape: f32[128,16], index: 5, kind: input, shape index: {}]
  %s6 = inlined_call_operand.vmem [shape: f32[1,16], index: 6, kind: input, shape index: {}]
  %s7 = inlined_call_operand.vmem [shape: f32[16,16], index: 7, kind: output, shape index: {}]
  %s8 = sld [smem:[#allocation0]]
  $region61: #{vae_reconstruction_forward_prepared.1} parent=0
    _
  %s10 = ssub.s32 1, %s8
  %s11 = scalar_select 0, %s10, %s8
  loop: start=0, step=1, limit=4
  $region2: #{vae_reconstruction_forward_prepared.1} parent=0 // loop_pre_header
    _
  $region3: #{vae_reconstruction_forward_prepared.1} parent=0 // loop_header
    %s13 = sphi 0, %s17
    %p14 = scmp.ge.s32.totalorder %s13, 4
    %s23 = sphi 0, %s25
    %s26 = sphi 0, %s23
    %s27 = sphi 0, %s26
    %s43 = sphi 0, %s27
    %s47 = sphi 0, %s47
    %s49 = sphi 0, %s47
    %s50 = sphi 0, %s49
    %s64 = sphi 0, %s50
    %s68 = sphi 0, %s68
    %s70 = sphi 0, %s68
    %s71 = sphi 0, %s70
    %s85 = sphi 0, %s71
    %s89 = sphi 0, %s89
    %s91 = sphi 0, %s89
    %s92 = sphi 0, %s91
    %s106 = sphi 0, %s92
    %s110 = sphi 0, %s110
    %s112 = sphi 0, %s110
    %s113 = sphi 0, %s112
    %s127 = sphi 0, %s113
    %s131 = sphi 0, %s131
    %s133 = sphi 0, %s131
    %s134 = sphi 0, %s133
    %s148 = sphi 0, %s134
    %s152 = sphi 0, %s152
    %s154 = sphi 0, %s152
    %s155 = sphi 0, %s154
    %s169 = sphi 0, %s155
    %s175 = sphi 0, %s177
    %s178 = sphi 0, %s175
    %s179 = sphi 0, %s178
    %s195 = sphi 0, %s179
  $region4: #{vae_reconstruction_forward_prepared.1} parent=0 // loop_header_branch
    %16 = sbr.rel (%p14) target = $region8
  $region5: #{vae_reconstruction_forward_prepared.1} parent=0 // loop_body
    %s18 = ssub.s32 %s13, 1
    %s19 = ssub.s32 %s13, 2
    %s20 = sadd.s32 %s13, 1
    %s21 = ssub.s32 %s13, %s20
    %p22 = scmp.eq.s32.totalorder %s21, 0
    %s24 = sadd.s32 %s23, 1
    %s25 = scalar_select %p22, %s23, %s24
    %p28 = pneg %p22
    %p29 = scmp.eq.s32.totalorder %s13, 1
    %p30 = por %p28, %p29
    %p31 = scmp.ne.s32.totalorder %s23, %s26
    %p32 = scmp.eq.s32.totalorder %s13, 0
    %p33 = por %p31, %p32
    %p34 = scmp.ne.s32.totalorder %s23, %s26
    %p35 = scmp.eq.s32.totalorder %s18, 1
    %p36 = por %p34, %p35
    %p37 = scmp.ne.s32.totalorder %s26, %s27
    %p38 = scmp.eq.s32.totalorder %s18, 0
    %p39 = por %p37, %p38
    %p40 = scmp.ne.s32.totalorder %s26, %s27
    %p41 = scmp.eq.s32.totalorder %s19, 1
    %p42 = por %p40, %p41
    %p44 = scmp.ne.s32.totalorder %s27, %s43
    %p45 = scmp.eq.s32.totalorder %s19, 0
    %p46 = por %p44, %p45
    %s48 = sadd.s32 %s47, 1
    %p51 = scmp.eq.s32.totalorder %s13, 1
    %p52 = scmp.ne.s32.totalorder %s47, %s49
    %p53 = scmp.eq.s32.totalorder %s13, 0
    %p54 = por %p52, %p53
    %p55 = scmp.ne.s32.totalorder %s47, %s49
    %p56 = scmp.eq.s32.totalorder %s18, 1
    %p57 = por %p55, %p56
    %p58 = scmp.ne.s32.totalorder %s49, %s50
    %p59 = scmp.eq.s32.totalorder %s18, 0
    %p60 = por %p58, %p59
    %p61 = scmp.ne.s32.totalorder %s49, %s50
    %p62 = scmp.eq.s32.totalorder %s19, 1
    %p63 = por %p61, %p62
    %p65 = scmp.ne.s32.totalorder %s50, %s64
    %p66 = scmp.eq.s32.totalorder %s19, 0
    %p67 = por %p65, %p66
    %s69 = sadd.s32 %s68, 1
    %p72 = scmp.eq.s32.totalorder %s13, 1
    %p73 = scmp.ne.s32.totalorder %s68, %s70
    %p74 = scmp.eq.s32.totalorder %s13, 0
    %p75 = por %p73, %p74
    %p76 = scmp.ne.s32.totalorder %s68, %s70
    %p77 = scmp.eq.s32.totalorder %s18, 1
    %p78 = por %p76, %p77
    %p79 = scmp.ne.s32.totalorder %s70, %s71
    %p80 = scmp.eq.s32.totalorder %s18, 0
    %p81 = por %p79, %p80
    %p82 = scmp.ne.s32.totalorder %s70, %s71
    %p83 = scmp.eq.s32.totalorder %s19, 1
    %p84 = por %p82, %p83
    %p86 = scmp.ne.s32.totalorder %s71, %s85
    %p87 = scmp.eq.s32.totalorder %s19, 0
    %p88 = por %p86, %p87
    %s90 = sadd.s32 %s89, 1
    %p93 = scmp.eq.s32.totalorder %s13, 1
    %p94 = scmp.ne.s32.totalorder %s89, %s91
    %p95 = scmp.eq.s32.totalorder %s13, 0
    %p96 = por %p94, %p95
    %p97 = scmp.ne.s32.totalorder %s89, %s91
    %p98 = scmp.eq.s32.totalorder %s18, 1
    %p99 = por %p97, %p98
    %p100 = scmp.ne.s32.totalorder %s91, %s92
    %p101 = scmp.eq.s32.totalorder %s18, 0
    %p102 = por %p100, %p101
    %p103 = scmp.ne.s32.totalorder %s91, %s92
    %p104 = scmp.eq.s32.totalorder %s19, 1
    %p105 = por %p103, %p104
    %p107 = scmp.ne.s32.totalorder %s92, %s106
    %p108 = scmp.eq.s32.totalorder %s19, 0
    %p109 = por %p107, %p108
    %s111 = sadd.s32 %s110, 1
    %p114 = scmp.eq.s32.totalorder %s13, 1
    %p115 = scmp.ne.s32.totalorder %s110, %s112
    %p116 = scmp.eq.s32.totalorder %s13, 0
    %p117 = por %p115, %p116
    %p118 = scmp.ne.s32.totalorder %s110, %s112
    %p119 = scmp.eq.s32.totalorder %s18, 1
    %p120 = por %p118, %p119
    %p121 = scmp.ne.s32.totalorder %s112, %s113
    %p122 = scmp.eq.s32.totalorder %s18, 0
    %p123 = por %p121, %p122
    %p124 = scmp.ne.s32.totalorder %s112, %s113
    %p125 = scmp.eq.s32.totalorder %s19, 1
    %p126 = por %p124, %p125
    %p128 = scmp.ne.s32.totalorder %s113, %s127
    %p129 = scmp.eq.s32.totalorder %s19, 0
    %p130 = por %p128, %p129
    %s132 = sadd.s32 %s131, 1
    %p135 = scmp.eq.s32.totalorder %s13, 1
    %p136 = scmp.ne.s32.totalorder %s131, %s133
    %p137 = scmp.eq.s32.totalorder %s13, 0
    %p138 = por %p136, %p137
    %p139 = scmp.ne.s32.totalorder %s131, %s133
    %p140 = scmp.eq.s32.totalorder %s18, 1
    %p141 = por %p139, %p140
    %p142 = scmp.ne.s32.totalorder %s133, %s134
    %p143 = scmp.eq.s32.totalorder %s18, 0
    %p144 = por %p142, %p143
    %p145 = scmp.ne.s32.totalorder %s133, %s134
    %p146 = scmp.eq.s32.totalorder %s19, 1
    %p147 = por %p145, %p146
    %p149 = scmp.ne.s32.totalorder %s134, %s148
    %p150 = scmp.eq.s32.totalorder %s19, 0
    %p151 = por %p149, %p150
    %s153 = sadd.s32 %s152, 1
    %p156 = scmp.eq.s32.totalorder %s13, 1
    %p157 = scmp.ne.s32.totalorder %s152, %s154
    %p158 = scmp.eq.s32.totalorder %s13, 0
    %p159 = por %p157, %p158
    %p160 = scmp.ne.s32.totalorder %s152, %s154
    %p161 = scmp.eq.s32.totalorder %s18, 1
    %p162 = por %p160, %p161
    %p163 = scmp.ne.s32.totalorder %s154, %s155
    %p164 = scmp.eq.s32.totalorder %s18, 0
    %p165 = por %p163, %p164
    %p166 = scmp.ne.s32.totalorder %s154, %s155
    %p167 = scmp.eq.s32.totalorder %s19, 1
    %p168 = por %p166, %p167
    %p170 = scmp.ne.s32.totalorder %s155, %s169
    %p171 = scmp.eq.s32.totalorder %s19, 0
    %p172 = por %p170, %p171
    %s173 = ssub.s32 %s13, %s20
    %p174 = scmp.eq.s32.totalorder %s173, 0
    %s176 = sadd.s32 %s175, 1
    %s177 = scalar_select %p174, %s175, %s176
    %p180 = pneg %p174
    %p181 = scmp.eq.s32.totalorder %s13, 1
    %p182 = por %p180, %p181
    %p183 = scmp.ne.s32.totalorder %s175, %s178
    %p184 = scmp.eq.s32.totalorder %s13, 0
    %p185 = por %p183, %p184
    %p186 = scmp.ne.s32.totalorder %s175, %s178
    %p187 = scmp.eq.s32.totalorder %s18, 1
    %p188 = por %p186, %p187
    %p189 = scmp.ne.s32.totalorder %s178, %s179
    %p190 = scmp.eq.s32.totalorder %s18, 0
    %p191 = por %p189, %p190
    %p192 = scmp.ne.s32.totalorder %s178, %s179
    %p193 = scmp.eq.s32.totalorder %s19, 1
    %p194 = por %p192, %p193
    %p196 = scmp.ne.s32.totalorder %s179, %s195
    %p197 = scmp.eq.s32.totalorder %s19, 0
    %p198 = por %p196, %p197
    %p199 = scmp.le.s32.totalorder 1, %s13
    %p200 = scmp.lt.s32.totalorder %s13, 3
    %p201 = pnand %p199, %p200
    %p202 = pneg %p201
    // Predicated region
    $region9: #{vae_reconstruction_forward_prepared.1} parent=5 // pred_check
      _
    $region10: #{vae_reconstruction_forward_prepared.1} parent=5 // pred_check_branch
      %204 = sbr.rel (%p201) target = $region12
    $region11: #{vae_reconstruction_forward_prepared.1} parent=5 // pred_region
      %s205 = ssub.s32 %s13, 1
      // Predicated region
      $region13: #{vae_reconstruction_forward_prepared.1} parent=11 // pred_check
        %p206 = pneg %p60
      $region14: #{vae_reconstruction_forward_prepared.1} parent=11 // pred_check_branch
        %208 = sbr.rel (%p206) target = $region16
      $region15: #{vae_reconstruction_forward_prepared.1} parent=11 // pred_region
        _
      $region16: #{vae_reconstruction_forward_prepared.1} parent=11 // pred_fallthru
        _
      // Predicated region
      $region17: #{vae_reconstruction_forward_prepared.1} parent=11 // pred_check
        %p209 = pneg %p81
      $region18: #{vae_reconstruction_forward_prepared.1} parent=11 // pred_check_branch
        %211 = sbr.rel (%p209) target = $region20
      $region19: #{vae_reconstruction_forward_prepared.1} parent=11 // pred_region
        _
      $region20: #{vae_reconstruction_forward_prepared.1} parent=11 // pred_fallthru
        _
      // Predicated region
      $region21: #{vae_reconstruction_forward_prepared.1} parent=11 // pred_check
        %p212 = pneg %p102
      $region22: #{vae_reconstruction_forward_prepared.1} parent=11 // pred_check_branch
        %214 = sbr.rel (%p212) target = $region24
      $region23: #{vae_reconstruction_forward_prepared.1} parent=11 // pred_region
        _
      $region24: #{vae_reconstruction_forward_prepared.1} parent=11 // pred_fallthru
        _
      // Predicated region
      $region25: #{vae_reconstruction_forward_prepared.1} parent=11 // pred_check
        %p215 = pneg %p123
      $region26: #{vae_reconstruction_forward_prepared.1} parent=11 // pred_check_branch
        %217 = sbr.rel (%p215) target = $region28
      $region27: #{vae_reconstruction_forward_prepared.1} parent=11 // pred_region
        _
      $region28: #{vae_reconstruction_forward_prepared.1} parent=11 // pred_fallthru
        _
      // Predicated region
      $region29: #{vae_reconstruction_forward_prepared.1} parent=11 // pred_check
        %p218 = pneg %p144
      $region30: #{vae_reconstruction_forward_prepared.1} parent=11 // pred_check_branch
        %220 = sbr.rel (%p218) target = $region32
      $region31: #{vae_reconstruction_forward_prepared.1} parent=11 // pred_region
        _
      $region32: #{vae_reconstruction_forward_prepared.1} parent=11 // pred_fallthru
        _
      // Predicated region
      $region33: #{vae_reconstruction_forward_prepared.1} parent=11 // pred_check
        %p221 = pneg %p165
      $region34: #{vae_reconstruction_forward_prepared.1} parent=11 // pred_check_branch
        %223 = sbr.rel (%p221) target = $region36
      $region35: #{vae_reconstruction_forward_prepared.1} parent=11 // pred_region
        _
      $region36: #{vae_reconstruction_forward_prepared.1} parent=11 // pred_fallthru
        _
    $region12: #{vae_reconstruction_forward_prepared.1} parent=5 // pred_fallthru
      _
    %p224 = scmp.lt.s32.totalorder %s13, 2
    // Predicated region
    $region37: #{vae_reconstruction_forward_prepared.1} parent=5 // pred_check
      %p225 = pneg %p224
    $region38: #{vae_reconstruction_forward_prepared.1} parent=5 // pred_check_branch
      %227 = sbr.rel (%p225) target = $region40
    $region39: #{vae_reconstruction_forward_prepared.1} parent=5 // pred_region
      // Predicated region
      $region41: #{vae_reconstruction_forward_prepared.1} parent=39 // pred_check
        %p228 = pneg %p33
      $region42: #{vae_reconstruction_forward_prepared.1} parent=39 // pred_check_branch
        %230 = sbr.rel (%p228) target = $region44
      $region43: #{vae_reconstruction_forward_prepared.1} parent=39 // pred_region
        %p231 = scmp.lt.s32.totalorder %s13, 1
        %s232 = scalar_select %p231, %s13, 1
        %s233 = smul.addr %s232, 8
        %s234 = scalar_lea.vmem %s0, %s233
      $region44: #{vae_reconstruction_forward_prepared.1} parent=39 // pred_fallthru
        _
    $region40: #{vae_reconstruction_forward_prepared.1} parent=5 // pred_fallthru
      _
    %p235 = scmp.le.s32.totalorder 1, %s13
    %p236 = scmp.lt.s32.totalorder %s13, 3
    %p237 = pnand %p235, %p236
    %p238 = pneg %p237
    // Predicated region
    $region45: #{vae_reconstruction_forward_prepared.1} parent=5 // pred_check
      _
    $region46: #{vae_reconstruction_forward_prepared.1} parent=5 // pred_check_branch
      %240 = sbr.rel (%p237) target = $region48
    $region47: #{vae_reconstruction_forward_prepared.1} parent=5 // pred_region
      %s241 = ssub.s32 %s13, 1
      %p242 = scmp.lt.s32.totalorder %s18, 1
      %s243 = scalar_select %p242, %s18, 1
      %s244 = smul.addr %s243, 8
      %s245 = scalar_lea.vmem %s0, %s244
      %p246 = pneg %p39
      %p247 = pneg %p36
      %p248 = pneg %p60
      %p249 = pneg %p57
      %p250 = pneg %p81
      %p251 = pneg %p78
      %p252 = pneg %p102
      %p253 = pneg %p99
      %p254 = pneg %p123
      %p255 = pneg %p120
      %p256 = pneg %p144
      %p257 = pneg %p141
      %p258 = pneg %p165
      %p259 = pneg %p162
      %p260 = pneg %p191
      %p261 = pneg %p188
      %p262 = scmp.lt.s32.totalorder %s18, 1
      %s263 = scalar_select %p262, %s18, 1
      %s264 = smul.addr %s263, 8
      %s265 = scalar_lea.vmem %s7, %s264
      %p266 = scmp.lt.s32.totalorder %s18, 1
      %s267 = scalar_select %p266, %s18, 1
      %s268 = smul.addr %s267, 8
      %s269 = scalar_lea.vmem %s0, %s268
      %p270 = scmp.lt.s32.totalorder %s18, 1
      %s271 = scalar_select %p270, %s18, 1
      %s272 = smul.addr %s271, 8
      %s273 = scalar_lea.vmem %s7, %s272
      %v274 = vld [vmem:[%s269] sm:$0xff]
      %v275 = vld [vmem:[%s1] sm:$0xff]
      %v276 = vld [vmem:[%s1 + $0x8] sm:$0xff]
      %v277 = vld [vmem:[%s1 + $0x10] sm:$0xff]
      %v278 = vld [vmem:[%s1 + $0x18] sm:$0xff]
      %v279 = vld [vmem:[%s2] sm:$0x1]
      %v281 = vlaneseq
      %v282 = vshrl.u32 %v281, 7
      %v283 = vsub.s32 0, %v282
      %v284 = vrot.slane %v279, %v283
      %vm286 = vcmask 261120
      %v288 = vsel %vm286, %v274, 0
      %290 = vmatprep.subr.mxu0 0.0
      %291 = vmatpush1.msra.mxu0 %v275
      %292 = vmatprep.subr.mxu0 0.0
      %293 = vmatpush1.msra.mxu0 %v276
      %294 = vmatprep.subr.mxu0 0.0
      %295 = vmatpush1.msra.mxu0 %v277
      %296 = vmatprep.subr.mxu0 0.0
      %297 = vmatpush1.msra.mxu0 %v278
      %298 = vmatprep.subr.mxu0 0.0
      %299 = vmatpush1.msra.mxu0 0.0
      %300 = vmatprep.subr.mxu0 0.0
      %301 = vmatpush1.msra.mxu0 0.0
      %302 = vmatprep.subr.mxu0 0.0
      %303 = vmatpush1.msra.mxu0 0.0
      %304 = vmatprep.subr.mxu0 0.0
      %305 = vmatpush1.msra.mxu0 0.0
      %306 = vmatprep.subr.mxu0 0.0
      %307 = vmatpush1.msra.mxu0 0.0
      %308 = vmatprep.subr.mxu0 0.0
      %309 = vmatpush1.msra.mxu0 0.0
      %310 = vmatprep.subr.mxu0 0.0
      %311 = vmatpush1.msra.mxu0 0.0
      %312 = vmatprep.subr.mxu0 0.0
      %313 = vmatpush1.msra.mxu0 0.0
      %314 = vmatprep.subr.mxu0 0.0
      %315 = vmatpush1.msra.mxu0 0.0
      %316 = vmatprep.subr.mxu0 0.0
      %317 = vmatpush1.msra.mxu0 0.0
      %318 = vmatprep.subr.mxu0 0.0
      %319 = vmatpush1.msra.mxu0 0.0
      %320 = vmatprep.subr.mxu0 0.0
      %321 = vmatpush1.msra.mxu0 0.0
      %322 = vmatprep.subr.mxu0 0.0
      %323 = vmatpush1.msra.mxu0 0.0
      %324 = vmatprep.subr.mxu0 0.0
      %325 = vmatpush1.msra.mxu0 0.0
      %326 = vmatprep.subr.mxu0 0.0
      %327 = vmatpush1.msra.mxu0 0.0
      %328 = vmatprep.subr.mxu0 0.0
      %329 = vmatpush1.msra.mxu0 0.0
      %330 = vmatprep.subr.mxu0 0.0
      %331 = vmatpush1.msra.mxu0 0.0
      %332 = vmatprep.subr.mxu0 0.0
      %333 = vmatpush1.msra.mxu0 0.0
      %334 = vmatprep.subr.mxu0 0.0
      %335 = vmatpush1.msra.mxu0 0.0
      %336 = vmatprep.subr.mxu0 0.0
      %337 = vmatpush1.msra.mxu0 0.0
      %338 = vmatprep.subr.mxu0 0.0
      %339 = vmatpush1.msra.mxu0 0.0
      %340 = vmatprep.subr.mxu0 0.0
      %341 = vmatpush1.msra.mxu0 0.0
      %342 = vmatprep.subr.mxu0 0.0
      %343 = vmatpush1.msra.mxu0 0.0
      %344 = vmatprep.subr.mxu0 0.0
      %345 = vmatpush1.msra.mxu0 0.0
      %346 = vmatprep.subr.mxu0 0.0
      %347 = vmatpush1.msra.mxu0 0.0
      %348 = vmatprep.subr.mxu0 0.0
      %349 = vmatpush1.msra.mxu0 0.0
      %350 = vmatprep.subr.mxu0 0.0
      %351 = vmatpush1.msra.mxu0 0.0
      %352 = vmatprep.subr.mxu0 0.0
      %353 = vmatpush1.msra.mxu0 0.0
      %354 = vmatprep.mubr.f32.mxu0 0.0
      %355 = vmatmul.mubr.f32.gmra.mrb[0].mxu0 %v288
      %v356 = vpop.f32.mrb[0].mxu0
      %v357 = vadd.f32 %v284, %v356
      %v358 = vpop.f32.mrb[0].mxu0
      %359 = vdwg.mxu0
      %v360 = vmax.f32 %v357, 0.0
      %v361 = vld [vmem:[%s3] sm:$0xff]
      %v362 = vld [vmem:[%s3 + $0x8] sm:$0xff]
      %v363 = vld [vmem:[%s3 + $0x10] sm:$0xff]
      %v364 = vld [vmem:[%s3 + $0x18] sm:$0xff]
      %v365 = vld [vmem:[%s3 + $0x20] sm:$0xff]
      %v366 = vld [vmem:[%s3 + $0x28] sm:$0xff]
      %v367 = vld [vmem:[%s3 + $0x30] sm:$0xff]
      %v368 = vld [vmem:[%s3 + $0x38] sm:$0xff]
      %v369 = vld [vmem:[%s3 + $0x40] sm:$0xff]
      %v370 = vld [vmem:[%s3 + $0x48] sm:$0xff]
      %v371 = vld [vmem:[%s3 + $0x50] sm:$0xff]
      %v372 = vld [vmem:[%s3 + $0x58] sm:$0xff]
      %v373 = vld [vmem:[%s3 + $0x60] sm:$0xff]
      %v374 = vld [vmem:[%s3 + $0x68] sm:$0xff]
      %v375 = vld [vmem:[%s3 + $0x70] sm:$0xff]
      %v376 = vld [vmem:[%s3 + $0x78] sm:$0xff]
      %v377 = vld [vmem:[%s4] sm:$0x1]
      %v379 = vlaneseq
      %v380 = vshrl.u32 %v379, 7
      %v381 = vsub.s32 0, %v380
      %v382 = vrot.slane %v377, %v381
      %384 = vmatprep.subr.mxu0 0.0
      %385 = vmatpush1.msra.mxu0 %v361
      %386 = vmatprep.subr.mxu0 0.0
      %387 = vmatpush1.msra.mxu0 %v362
      %388 = vmatprep.subr.mxu0 0.0
      %389 = vmatpush1.msra.mxu0 %v363
      %390 = vmatprep.subr.mxu0 0.0
      %391 = vmatpush1.msra.mxu0 %v364
      %392 = vmatprep.subr.mxu0 0.0
      %393 = vmatpush1.msra.mxu0 %v365
      %394 = vmatprep.subr.mxu0 0.0
      %395 = vmatpush1.msra.mxu0 %v366
      %396 = vmatprep.subr.mxu0 0.0
      %397 = vmatpush1.msra.mxu0 %v367
      %398 = vmatprep.subr.mxu0 0.0
      %399 = vmatpush1.msra.mxu0 %v368
      %400 = vmatprep.subr.mxu0 0.0
      %401 = vmatpush1.msra.mxu0 %v369
      %402 = vmatprep.subr.mxu0 0.0
      %403 = vmatpush1.msra.mxu0 %v370
      %404 = vmatprep.subr.mxu0 0.0
      %405 = vmatpush1.msra.mxu0 %v371
      %406 = vmatprep.subr.mxu0 0.0
      %407 = vmatpush1.msra.mxu0 %v372
      %408 = vmatprep.subr.mxu0 0.0
      %409 = vmatpush1.msra.mxu0 %v373
      %410 = vmatprep.subr.mxu0 0.0
      %411 = vmatpush1.msra.mxu0 %v374
      %412 = vmatprep.subr.mxu0 0.0
      %413 = vmatpush1.msra.mxu0 %v375
      %414 = vmatprep.subr.mxu0 0.0
      %415 = vmatpush1.msra.mxu0 %v376
      %416 = vmatprep.subr.mxu0 0.0
      %417 = vmatpush1.msra.mxu0 0.0
      %418 = vmatprep.subr.mxu0 0.0
      %419 = vmatpush1.msra.mxu0 0.0
      %420 = vmatprep.subr.mxu0 0.0
      %421 = vmatpush1.msra.mxu0 0.0
      %422 = vmatprep.subr.mxu0 0.0
      %423 = vmatpush1.msra.mxu0 0.0
      %424 = vmatprep.subr.mxu0 0.0
      %425 = vmatpush1.msra.mxu0 0.0
      %426 = vmatprep.subr.mxu0 0.0
      %427 = vmatpush1.msra.mxu0 0.0
      %428 = vmatprep.subr.mxu0 0.0
      %429 = vmatpush1.msra.mxu0 0.0
      %430 = vmatprep.subr.mxu0 0.0
      %431 = vmatpush1.msra.mxu0 0.0
      %432 = vmatprep.subr.mxu0 0.0
      %433 = vmatpush1.msra.mxu0 0.0
      %434 = vmatprep.subr.mxu0 0.0
      %435 = vmatpush1.msra.mxu0 0.0
      %436 = vmatprep.subr.mxu0 0.0
      %437 = vmatpush1.msra.mxu0 0.0
      %438 = vmatprep.subr.mxu0 0.0
      %439 = vmatpush1.msra.mxu0 0.0
      %440 = vmatprep.subr.mxu0 0.0
      %441 = vmatpush1.msra.mxu0 0.0
      %442 = vmatprep.subr.mxu0 0.0
      %443 = vmatpush1.msra.mxu0 0.0
      %444 = vmatprep.subr.mxu0 0.0
      %445 = vmatpush1.msra.mxu0 0.0
      %446 = vmatprep.subr.mxu0 0.0
      %447 = vmatpush1.msra.mxu0 0.0
      %448 = vmatprep.mubr.f32.mxu0 0.0
      %449 = vmatmul.mubr.f32.gmra.mrb[0].mxu0 %v360
      %v450 = vpop.f32.mrb[0].mxu0
      %v451 = vadd.f32 %v382, %v450
      %v452 = vpop.f32.mrb[0].mxu0
      %453 = vdwg.mxu0
      %v454 = vmax.f32 %v451, 0.0
      %v455 = vld [vmem:[%s5] sm:$0xff]
      %v456 = vld [vmem:[%s5 + $0x8] sm:$0xff]
      %v457 = vld [vmem:[%s5 + $0x10] sm:$0xff]
      %v458 = vld [vmem:[%s5 + $0x18] sm:$0xff]
      %v459 = vld [vmem:[%s5 + $0x20] sm:$0xff]
      %v460 = vld [vmem:[%s5 + $0x28] sm:$0xff]
      %v461 = vld [vmem:[%s5 + $0x30] sm:$0xff]
      %v462 = vld [vmem:[%s5 + $0x38] sm:$0xff]
      %v463 = vld [vmem:[%s5 + $0x40] sm:$0xff]
      %v464 = vld [vmem:[%s5 + $0x48] sm:$0xff]
      %v465 = vld [vmem:[%s5 + $0x50] sm:$0xff]
      %v466 = vld [vmem:[%s5 + $0x58] sm:$0xff]
      %v467 = vld [vmem:[%s5 + $0x60] sm:$0xff]
      %v468 = vld [vmem:[%s5 + $0x68] sm:$0xff]
      %v469 = vld [vmem:[%s5 + $0x70] sm:$0xff]
      %v470 = vld [vmem:[%s5 + $0x78] sm:$0xff]
      %v471 = vld [vmem:[%s6] sm:$0x1]
      %v473 = vlaneseq
      %v474 = vshrl.u32 %v473, 7
      %v475 = vsub.s32 0, %v474
      %v476 = vrot.slane %v471, %v475
      %478 = vmatprep.subr.mxu0 0.0
      %479 = vmatpush1.msra.mxu0 %v455
      %480 = vmatprep.subr.mxu0 0.0
      %481 = vmatpush1.msra.mxu0 %v456
      %482 = vmatprep.subr.mxu0 0.0
      %483 = vmatpush1.msra.mxu0 %v457
      %484 = vmatprep.subr.mxu0 0.0
      %485 = vmatpush1.msra.mxu0 %v458
      %486 = vmatprep.subr.mxu0 0.0
      %487 = vmatpush1.msra.mxu0 %v459
      %488 = vmatprep.subr.mxu0 0.0
      %489 = vmatpush1.msra.mxu0 %v460
      %490 = vmatprep.subr.mxu0 0.0
      %491 = vmatpush1.msra.mxu0 %v461
      %492 = vmatprep.subr.mxu0 0.0
      %493 = vmatpush1.msra.mxu0 %v462
      %494 = vmatprep.subr.mxu0 0.0
      %495 = vmatpush1.msra.mxu0 %v463
      %496 = vmatprep.subr.mxu0 0.0
      %497 = vmatpush1.msra.mxu0 %v464
      %498 = vmatprep.subr.mxu0 0.0
      %499 = vmatpush1.msra.mxu0 %v465
      %500 = vmatprep.subr.mxu0 0.0
      %501 = vmatpush1.msra.mxu0 %v466
      %502 = vmatprep.subr.mxu0 0.0
      %503 = vmatpush1.msra.mxu0 %v467
      %504 = vmatprep.subr.mxu0 0.0
      %505 = vmatpush1.msra.mxu0 %v468
      %506 = vmatprep.subr.mxu0 0.0
      %507 = vmatpush1.msra.mxu0 %v469
      %508 = vmatprep.subr.mxu0 0.0
      %509 = vmatpush1.msra.mxu0 %v470
      %510 = vmatprep.subr.mxu0 0.0
      %511 = vmatpush1.msra.mxu0 0.0
      %512 = vmatprep.subr.mxu0 0.0
      %513 = vmatpush1.msra.mxu0 0.0
      %514 = vmatprep.subr.mxu0 0.0
      %515 = vmatpush1.msra.mxu0 0.0
      %516 = vmatprep.subr.mxu0 0.0
      %517 = vmatpush1.msra.mxu0 0.0
      %518 = vmatprep.subr.mxu0 0.0
      %519 = vmatpush1.msra.mxu0 0.0
      %520 = vmatprep.subr.mxu0 0.0
      %521 = vmatpush1.msra.mxu0 0.0
      %522 = vmatprep.subr.mxu0 0.0
      %523 = vmatpush1.msra.mxu0 0.0
      %524 = vmatprep.subr.mxu0 0.0
      %525 = vmatpush1.msra.mxu0 0.0
      %526 = vmatprep.subr.mxu0 0.0
      %527 = vmatpush1.msra.mxu0 0.0
      %528 = vmatprep.subr.mxu0 0.0
      %529 = vmatpush1.msra.mxu0 0.0
      %530 = vmatprep.subr.mxu0 0.0
      %531 = vmatpush1.msra.mxu0 0.0
      %532 = vmatprep.subr.mxu0 0.0
      %533 = vmatpush1.msra.mxu0 0.0
      %534 = vmatprep.subr.mxu0 0.0
      %535 = vmatpush1.msra.mxu0 0.0
      %536 = vmatprep.subr.mxu0 0.0
      %537 = vmatpush1.msra.mxu0 0.0
      %538 = vmatprep.subr.mxu0 0.0
      %539 = vmatpush1.msra.mxu0 0.0
      %540 = vmatprep.subr.mxu0 0.0
      %541 = vmatpush1.msra.mxu0 0.0
      %542 = vmatprep.mubr.f32.mxu0 0.0
      %543 = vmatmul.mubr.f32.gmra.mrb[0].mxu0 %v454
      %v544 = vpop.f32.mrb[0].mxu0
      %v545 = vadd.f32 %v476, %v544
      %v546 = vpop.f32.mrb[0].mxu0
      %547 = vdwg.mxu0
      %vm548 = vcmask 130048
      %549 = vst.msk [vmem:[%s273] sm:$0xff] %vm548, %v545
      %p550 = scmp.lt.s32.totalorder %s18, 1
      %s551 = scalar_select %p550, %s18, 1
      %s552 = smul.addr %s551, 8
      %s553 = scalar_lea.vmem %s7, %s552
      // Predicated region
      $region49: #{vae_reconstruction_forward_prepared.1} parent=47 // pred_check
        %p554 = pneg %p188
      $region50: #{vae_reconstruction_forward_prepared.1} parent=47 // pred_check_branch
        %556 = sbr.rel (%p554) target = $region52
      $region51: #{vae_reconstruction_forward_prepared.1} parent=47 // pred_region
        _
      $region52: #{vae_reconstruction_forward_prepared.1} parent=47 // pred_fallthru
        _
    $region48: #{vae_reconstruction_forward_prepared.1} parent=5 // pred_fallthru
      _
    %p557 = scmp.le.s32.totalorder 2, %s13
    // Predicated region
    $region53: #{vae_reconstruction_forward_prepared.1} parent=5 // pred_check
      %p558 = pneg %p557
    $region54: #{vae_reconstruction_forward_prepared.1} parent=5 // pred_check_branch
      %560 = sbr.rel (%p558) target = $region56
    $region55: #{vae_reconstruction_forward_prepared.1} parent=5 // pred_region
      %s561 = ssub.s32 %s13, 2
      // Predicated region
      $region57: #{vae_reconstruction_forward_prepared.1} parent=55 // pred_check
        %p562 = pneg %p194
      $region58: #{vae_reconstruction_forward_prepared.1} parent=55 // pred_check_branch
        %564 = sbr.rel (%p562) target = $region60
      $region59: #{vae_reconstruction_forward_prepared.1} parent=55 // pred_region
        %p565 = scmp.lt.s32.totalorder %s19, 1
        %s566 = scalar_select %p565, %s19, 1
        %s567 = smul.addr %s566, 8
        %s568 = scalar_lea.vmem %s7, %s567
      $region60: #{vae_reconstruction_forward_prepared.1} parent=55 // pred_fallthru
        _
    $region56: #{vae_reconstruction_forward_prepared.1} parent=5 // pred_fallthru
      _
  $region6: #{vae_reconstruction_forward_prepared.1} parent=0 // loop_footer
    %s17 = sadd.s32 1, %s13
  $region7: #{vae_reconstruction_forward_prepared.1} parent=0 // loop_footer_branch
    %12 = sbr.rel target = $region3
  $region8: #{vae_reconstruction_forward_prepared.1} parent=0 // loop_exit
    _

</llo_original>
